<compile_context>
chip_gen: v7x
topology: tpu7x:2x2x1
jax: 0.10.0
libtpu: 0.0.40
codegen_flags: <defaults>
</compile_context>

<pallas_src>
import jax
import jax.numpy as jnp
from jax import lax
from jax.experimental import pallas as pl
from jax.experimental.pallas import tpu as pltpu


def _contrastive_loss_kernel(pred_ref, label_ref, len_ref, out_ref):
    """One program = (Bt examples) x (tR rows) x (all T columns).

    pred_ref, label_ref : (Bt, tR, T)  native dtype (e.g. bf16 / f32)
    len_ref             : (Bt, 1, 1)   int32 valid lengths
    out_ref             : (1, 1, T)    float32 lane-dense partial sum
    """
    r = pl.program_id(1)
    bt, tr, t = pred_ref.shape

    # |pred - label| in the input dtype (bf16 runs packed/native on v6e/v7x),
    # single f32 cast afterwards (accumulation stays f32).  On v5e the
    # compiler upcasts the bf16 math; correctness is unchanged.
    diff = jnp.abs(pred_ref[...] - label_ref[...]).astype(jnp.float32)

    lengths = len_ref[...]                                        # (Bt,1,1) i32

    # Row mask is the only per-element gating: one select per element,
    # mask vector itself is just O(Bt*tR).  NaN-safe for the unspecified
    # contents of a ragged tail row block (row_idx >= T >= length there).
    row_idx = lax.broadcasted_iota(jnp.int32, (bt, tr, 1), 1) + r * tr
    masked = jnp.where(row_idx < lengths, diff, 0.0)              # (Bt,tR,T)

    # Reduce over rows first; column mask and 1/len^2 apply to the already
    # row-reduced partials -> O(Bt*T) epilogue work instead of per element.
    rowsum = jnp.sum(masked, axis=1, keepdims=True)               # (Bt,1,T)

    col_idx = lax.broadcasted_iota(jnp.int32, (bt, 1, t), 2)
    len_f = lengths.astype(jnp.float32)                           # f32: no i32 overflow
    inv_denom = 1.0 / jnp.maximum(len_f * len_f, 1.0)             # (Bt,1,1)
    col_w = jnp.where(col_idx < lengths, inv_denom, 0.0)          # (Bt,1,T)

    out_ref[...] = jnp.sum(rowsum * col_w, axis=0, keepdims=True)  # (1,1,T)


def _choose_tiles(batch, t, itemsize, budget_bytes):
    """Pick (batch_tile, row_tile) so one input block is roughly budget_bytes."""
    # Sublane granularity of the packed layout tile for this dtype:
    # f32 -> 8 rows, bf16 -> 16, int8/fp8 -> 32.
    granule = 8 * max(1, 4 // itemsize)
    example_bytes = t * t * itemsize

    if example_bytes <= budget_bytes:
        # Fuse whole examples per grid step.  Cap Bt so the padded (Bt,1,1)
        # lengths block stays tiny, and keep >= 2 grid steps so both v7x
        # TensorCores get work under dimension_semantics=("parallel", ...).
        batch_tile = max(1, min(batch, budget_bytes // example_bytes, 256))
        if batch_tile >= batch and batch > 1:
            batch_tile = (batch + 1) // 2
        return int(batch_tile), t

    # One example exceeds the budget (large T): tile rows, keep the column
    # axis full-T so loads/stores stay lane-dense.  Row tile is the largest
    # dtype-aware sublane multiple that fits; it need NOT divide T (the grid
    # uses cdiv and the row mask neutralizes the ragged tail block).
    max_rows = max(1, budget_bytes // (t * itemsize))
    row_tile = (max_rows // granule) * granule
    if row_tile == 0:
        row_tile = granule
    row_tile = min(row_tile, t)
    return 1, int(row_tile)


def contrastive_loss(predictions, label_batch, length_batch,
                     *, vmem_budget_bytes=4 * 1024 * 1024):
    """predictions, label_batch: (B, T, T); length_batch: (B,) ints.

    Returns mean_b [ sum_{i<L_b, j<L_b} |pred - label| / max(L_b^2, 1) ].
    """
    b, t, _ = predictions.shape
    length_batch = length_batch.astype(jnp.int32)

    itemsize = jnp.dtype(predictions.dtype).itemsize
    batch_tile, row_tile = _choose_tiles(b, t, itemsize, vmem_budget_bytes)

    num_batch_tiles = int(pl.cdiv(b, batch_tile))
    num_row_tiles = int(pl.cdiv(t, row_tile))

    # Pad the batch so it divides evenly into batch tiles.  Padded examples
    # have length 0 -> fully masked -> contribute exactly 0 to the sum.
    b_pad = num_batch_tiles * batch_tile
    if b_pad != b:
        pad = b_pad - b
        predictions = jnp.pad(predictions, ((0, pad), (0, 0), (0, 0)))
        label_batch = jnp.pad(label_batch, ((0, pad), (0, 0), (0, 0)))
        length_batch = jnp.pad(length_batch, ((0, pad),))

    lengths3 = length_batch.reshape(b_pad, 1, 1)

    # Explicit scoped-VMEM limit: 2 big inputs x 2 pipeline buffers x block,
    # plus the small lengths/output blocks and head-room.  ~20-24 MiB with the
    # default budget -> fits v5e/v6e (128 MiB phys) and v7x (64 MiB phys).
    block_bytes = batch_tile * row_tile * t * itemsize
    len_block_bytes = batch_tile * 8 * 128 * 4
    out_block_bytes = 8 * int(pl.cdiv(t, 128)) * 128 * 4
    vmem_limit = int(4 * block_bytes + 2 * len_block_bytes
                     + 2 * out_block_bytes + (4 << 20))
    vmem_limit = max(vmem_limit, 16 << 20)

    partials = pl.pallas_call(
        _contrastive_loss_kernel,
        out_shape=jax.ShapeDtypeStruct(
            (num_batch_tiles * num_row_tiles, 1, t), jnp.float32),
        grid=(num_batch_tiles, num_row_tiles),
        in_specs=[
            pl.BlockSpec((batch_tile, row_tile, t), lambda i, r: (i, r, 0)),
            pl.BlockSpec((batch_tile, row_tile, t), lambda i, r: (i, r, 0)),
            # TODO(synk): lengths could ride scalar prefetch (SMEM); kept as a
            # tiny VMEM block so mask construction stays fully vectorized
            # without per-example unrolled scalar reads.
            pl.BlockSpec((batch_tile, 1, 1), lambda i, r: (i, 0, 0)),
        ],
        out_specs=pl.BlockSpec(
            (1, 1, t), lambda i, r: (i * num_row_tiles + r, 0, 0)),
        compiler_params=pltpu.CompilerParams(
            dimension_semantics=("parallel", "parallel"),
            vmem_limit_bytes=vmem_limit),
    )(predictions, label_batch, lengths3)

    # Final cross-lane reduction + batch mean in plain JAX (tiny f32 slab).
    return jnp.sum(partials) / jnp.float32(b)


def _reference_loss(predictions, label_batch, length_batch):
    """Pure-JAX reference of the same inferred semantics (for sanity check)."""
    predictions = predictions.astype(jnp.float32)
    label_batch = label_batch.astype(jnp.float32)
    length_batch = length_batch.astype(jnp.int32)
    t = predictions.shape[1]
    idx = jnp.arange(t)
    mask = (idx[None, :, None] < length_batch[:, None, None]) & (
        idx[None, None, :] < length_batch[:, None, None])
    diff = jnp.abs(predictions - label_batch) * mask.astype(jnp.float32)
    denom = jnp.maximum(length_batch.astype(jnp.float32) ** 2, 1.0)
    return jnp.mean(jnp.sum(diff, axis=(1, 2)) / denom)


if __name__ == "__main__":
    key = jax.random.PRNGKey(0)

    # Case 1: small f32 inputs (B=2, T=8); grid split (2,1) so 2 steps.
    k1, k2 = jax.random.split(key)
    preds = jax.random.normal(k1, (2, 8, 8), dtype=jnp.float32)
    labels = jax.random.normal(k2, (2, 8, 8), dtype=jnp.float32)
    lens = jnp.array([8, 5], dtype=jnp.int32)
    out = contrastive_loss(preds, labels, lens)
    jax.block_until_ready(out)
    ref = _reference_loss(preds, labels, lens)
    assert jnp.allclose(out, ref, atol=1e-5, rtol=1e-5), (out, ref)

    # Case 2: bf16 inputs stay bf16 in HBM; sub/abs runs in bf16 in-kernel
    # (f32 accumulation) -> slightly looser tolerance vs the f32 reference.
    k3, k4 = jax.random.split(k1)
    preds_bf = jax.random.normal(k3, (3, 16, 16), dtype=jnp.float32).astype(jnp.bfloat16)
    labels_bf = jax.random.normal(k4, (3, 16, 16), dtype=jnp.float32).astype(jnp.bfloat16)
    lens_bf = jnp.array([16, 9, 3], dtype=jnp.int32)
    out_bf = contrastive_loss(preds_bf, labels_bf, lens_bf)
    jax.block_until_ready(out_bf)
    ref_bf = _reference_loss(preds_bf, labels_bf, lens_bf)
    assert jnp.allclose(out_bf, ref_bf, atol=1e-3, rtol=5e-3), (out_bf, ref_bf)

    # Case 3: tiny VMEM budget forces the row-tiling path (grid = (3, 2)).
    k5, k6 = jax.random.split(k3)
    preds3 = jax.random.normal(k5, (3, 16, 16), dtype=jnp.float32)
    labels3 = jax.random.normal(k6, (3, 16, 16), dtype=jnp.float32)
    lens3 = jnp.array([16, 11, 4], dtype=jnp.int32)
    out3 = contrastive_loss(preds3, labels3, lens3, vmem_budget_bytes=512)
    jax.block_until_ready(out3)
    ref3 = _reference_loss(preds3, labels3, lens3)
    assert jnp.allclose(out3, ref3, atol=1e-5, rtol=1e-5), (out3, ref3)

    # Case 4: batch tile (2) smaller than B (3) exercises zero-length padding.
    preds4 = jax.random.normal(k5, (3, 8, 8), dtype=jnp.float32)
    labels4 = jax.random.normal(k6, (3, 8, 8), dtype=jnp.float32)
    lens4 = jnp.array([8, 6, 2], dtype=jnp.int32)
    out4 = contrastive_loss(preds4, labels4, lens4, vmem_budget_bytes=512)
    jax.block_until_ready(out4)
    ref4 = _reference_loss(preds4, labels4, lens4)
    assert jnp.allclose(out4, ref4, atol=1e-5, rtol=1e-5), (out4, ref4)

    # Case 5: T=20 with 8-row tiles -> row tile does NOT divide T; the ragged
    # tail block is neutralized by the row mask (grid = (2, 3)).
    k7, k8 = jax.random.split(k5)
    preds5 = jax.random.normal(k7, (2, 20, 20), dtype=jnp.float32)
    labels5 = jax.random.normal(k8, (2, 20, 20), dtype=jnp.float32)
    lens5 = jnp.array([20, 13], dtype=jnp.int32)
    out5 = contrastive_loss(preds5, labels5, lens5, vmem_budget_bytes=512)
    jax.block_until_ready(out5)
    ref5 = _reference_loss(preds5, labels5, lens5)
    assert jnp.allclose(out5, ref5, atol=1e-5, rtol=1e-5), (out5, ref5)

    print("KERNEL_OK")
</pallas_src>

<mosaic_0001>
module attributes {stable_mosaic.version = 11 : i64} {
  func.func @_contrastive_loss_kernel(%arg0: i32, %arg1: i32, %arg2: memref<1x8x8xf32, #tpu.memory_space<vmem>>, %arg3: memref<1x8x8xf32, #tpu.memory_space<vmem>>, %arg4: memref<1x1x1xi32, #tpu.memory_space<vmem>>, %arg5: memref<1x1x8xf32, #tpu.memory_space<vmem>>) attributes {dimension_semantics = [#tpu.dimension_semantics<parallel>, #tpu.dimension_semantics<parallel>], iteration_bounds = array<i64: 2, 1>, scalar_prefetch = 0 : i64, scratch_operands = 0 : i64, tpu.core_type = #tpu.core_type<tc>, window_params = [{transform_indices = @transform_0, window_bounds = array<i64: 1, 8, 8>}, {transform_indices = @transform_1, window_bounds = array<i64: 1, 8, 8>}, {transform_indices = @transform_2, window_bounds = array<i64: 1, 1, 1>}, {transform_indices = @transform_3, window_bounds = array<i64: 1, 1, 8>}]} {
    %c0 = arith.constant 0 : index
    %c0_0 = arith.constant 0 : index
    %c0_1 = arith.constant 0 : index
    %0 = vector.load %arg2[%c0, %c0_0, %c0_1] : memref<1x8x8xf32, #tpu.memory_space<vmem>>, vector<1x8x8xf32>
    %c0_2 = arith.constant 0 : index
    %c0_3 = arith.constant 0 : index
    %c0_4 = arith.constant 0 : index
    %1 = vector.load %arg3[%c0_2, %c0_3, %c0_4] : memref<1x8x8xf32, #tpu.memory_space<vmem>>, vector<1x8x8xf32>
    %2 = arith.subf %0, %1 : vector<1x8x8xf32>
    %3 = math.absf %2 : vector<1x8x8xf32>
    %c0_5 = arith.constant 0 : index
    %c0_6 = arith.constant 0 : index
    %c0_7 = arith.constant 0 : index
    %4 = vector.load %arg4[%c0_5, %c0_6, %c0_7] : memref<1x1x1xi32, #tpu.memory_space<vmem>>, vector<1x1x1xi32>
    %5 = tpu.iota {dimensions = array<i32: 1>} : vector<1x8x1xi32>
    %c8_i32 = arith.constant 8 : i32
    %6 = arith.muli %arg1, %c8_i32 : i32
    %7 = vector.broadcast %6 : i32 to vector<1x8x1xi32>
    %8 = arith.addi %5, %7 : vector<1x8x1xi32>
    %9 = vector.broadcast %4 : vector<1x1x1xi32> to vector<1x8x1xi32>
    %10 = arith.cmpi slt, %8, %9 : vector<1x8x1xi32>
    %cst = arith.constant 0.000000e+00 : f32
    %11 = vector.shape_cast %10 : vector<1x8x1xi1> to vector<1x8x1xi1>
    %12 = vector.broadcast %11 : vector<1x8x1xi1> to vector<1x8x8xi1>
    %13 = vector.broadcast %cst : f32 to vector<1x8x8xf32>
    %14 = arith.select %12, %3, %13 : vector<1x8x8xi1>, vector<1x8x8xf32>
    %cst_8 = arith.constant dense<0.000000e+00> : vector<1x8xf32>
    %15 = vector.multi_reduction <add>, %14, %cst_8 [1] : vector<1x8x8xf32> to vector<1x8xf32>
    %16 = vector.shape_cast %15 : vector<1x8xf32> to vector<1x1x8xf32>
    %17 = tpu.iota {dimensions = array<i32: 2>} : vector<1x1x8xi32>
    %18 = arith.sitofp %4 : vector<1x1x1xi32> to vector<1x1x1xf32>
    %19 = arith.mulf %18, %18 : vector<1x1x1xf32>
    %cst_9 = arith.constant 1.000000e+00 : f32
    %20 = vector.broadcast %cst_9 : f32 to vector<1x1x1xf32>
    %21 = arith.maximumf %19, %20 : vector<1x1x1xf32>
    %cst_10 = arith.constant 1.000000e+00 : f32
    %22 = vector.broadcast %cst_10 : f32 to vector<1x1x1xf32>
    %23 = arith.divf %22, %21 : vector<1x1x1xf32>
    %24 = vector.broadcast %4 : vector<1x1x1xi32> to vector<1x1x8xi32>
    %25 = arith.cmpi slt, %17, %24 : vector<1x1x8xi32>
    %cst_11 = arith.constant 0.000000e+00 : f32
    %26 = vector.shape_cast %23 : vector<1x1x1xf32> to vector<1x1x1xf32>
    %27 = vector.broadcast %26 : vector<1x1x1xf32> to vector<1x1x8xf32>
    %28 = vector.broadcast %cst_11 : f32 to vector<1x1x8xf32>
    %29 = arith.select %25, %27, %28 : vector<1x1x8xi1>, vector<1x1x8xf32>
    %30 = arith.mulf %16, %29 : vector<1x1x8xf32>
    %cst_12 = arith.constant dense<0.000000e+00> : vector<1x8xf32>
    %31 = vector.multi_reduction <add>, %30, %cst_12 [0] : vector<1x1x8xf32> to vector<1x8xf32>
    %32 = vector.shape_cast %31 : vector<1x8xf32> to vector<1x1x8xf32>
    %c0_13 = arith.constant 0 : index
    %c0_14 = arith.constant 0 : index
    %c0_15 = arith.constant 0 : index
    %33 = vector.load %arg5[%c0_13, %c0_14, %c0_15] : memref<1x1x8xf32, #tpu.memory_space<vmem>>, vector<1x1x8xf32>
    tpu.vector_store %arg5[%c0_13, %c0_14, %c0_15], %32 {strides = array<i32>} : memref<1x1x8xf32, #tpu.memory_space<vmem>>, vector<1x1x8xf32>,
    return
  }
  func.func @transform_0(%arg0: i32, %arg1: i32) -> (i32, i32, i32) {
    %c0_i32 = arith.constant 0 : i32
    %c0_i32_0 = arith.constant 0 : i32
    return %arg0, %arg1, %c0_i32 : i32, i32, i32
  }
  func.func @transform_1(%arg0: i32, %arg1: i32) -> (i32, i32, i32) {
    %c0_i32 = arith.constant 0 : i32
    %c0_i32_0 = arith.constant 0 : i32
    return %arg0, %arg1, %c0_i32 : i32, i32, i32
  }
  func.func @transform_2(%arg0: i32, %arg1: i32) -> (i32, i32, i32) {
    %c0_i32 = arith.constant 0 : i32
    %c0_i32_0 = arith.constant 0 : i32
    %c0_i32_1 = arith.constant 0 : i32
    return %arg0, %c0_i32, %c0_i32_0 : i32, i32, i32
  }
  func.func @transform_3(%arg0: i32, %arg1: i32) -> (i32, i32, i32) {
    %c1_i32 = arith.constant 1 : i32
    %0 = arith.muli %arg0, %c1_i32 : i32
    %1 = arith.addi %0, %arg1 : i32
    %c0_i32 = arith.constant 0 : i32
    %c0_i32_0 = arith.constant 0 : i32
    %c0_i32_1 = arith.constant 0 : i32
    return %1, %c0_i32, %c0_i32_0 : i32, i32, i32
  }
}

</mosaic_0001>

<llo_original>
// kernel: tpu_custom_call.1
$region0: #{tpu_custom_call.1}
  #allocation0 [shape = 'u32[]', space=smem, size = 0x4, offset = 0x4, fixed_abs, tag = 'smem constant byte address 0x4 - core index']
  #allocation1 [shape = 'u32[144,128]{1,0:T(1,128)}', space=vmem, size = 0x12000, scoped, tag = 'internal scratch']
  %s0 = inlined_call_operand.hbm [shape: f32[2,8,8], index: 0, kind: input, shape index: {}]
  %s1 = inlined_call_operand.hbm [shape: f32[2,8,8], index: 1, kind: input, shape index: {}]
  %s2 = inlined_call_operand.vmem [shape: s32[2,1,1], index: 2, kind: input, shape index: {}]
  %s3 = inlined_call_operand.hbm [shape: f32[2,1,8], index: 3, kind: output, shape index: {}]
  %s4 = sld [smem:[#allocation0]]
  $region53: #{tpu_custom_call.1} parent=0
    _
  %s6 = ssub.s32 1, %s4
  %s7 = scalar_select 0, %s6, %s4
  $region1: #{tpu_custom_call.1} parent=0
    #allocation2 [shape = 'u8[8192]{0}', space=vmem, size = 0x2000, scoped, tag = 'input window, operand 0']
    #allocation3 [shape = 's32[2]{0}', space=sflag, size = 0x8, scoped, tag = 'scoped memory for tpu_custom_call.1']
    #allocation4 [shape = 's32[2]{0}', space=sflag, size = 0x8, scoped, tag = 'scoped memory for tpu_custom_call.1']
    #allocation5 [shape = 'u8[8192]{0}', space=vmem, size = 0x2000, scoped, tag = 'input window, operand 1']
    #allocation6 [shape = 's32[2]{0}', space=sflag, size = 0x8, scoped, tag = 'scoped memory for tpu_custom_call.1']
    #allocation7 [shape = 'u8[1024]{0}', space=vmem, size = 0x400, scoped, tag = 'output window, operand 0']
    %8 = vsyncpa [#allocation3], 0
    %s9 = scalar_lea.sflag [#allocation3], 1
    %10 = vsyncpa %s9, 0
    %11 = vsyncpa [#allocation6], 0
    %s12 = scalar_lea.sflag [#allocation6], 1
    %13 = vsyncpa %s12, 0
    %14 = vsyncpa [#allocation4], 0
    %s15 = scalar_lea.sflag [#allocation4], 1
    %16 = vsyncpa %s15, 0
    loop: start=0, step=1, limit=4
    $region2: #{tpu_custom_call.1} parent=1 // loop_pre_header
      _
    $region3: #{tpu_custom_call.1} parent=1 // loop_header
      %s18 = sphi 0, %s22
      %p19 = scmp.ge.s32.totalorder %s18, 4
      %s25 = sphi 0, %s37
      %s26 = sphi 0, %s33
      %s27 = sphi 0, %s25
      %s28 = sphi 0, %s26
      %s29 = sphi 0, %s27
      %s30 = sphi 0, %s28
      %s42 = sphi 0, %s44
      %s45 = sphi 0, %s42
      %s46 = sphi 0, %s45
      %s62 = sphi 0, %s46
      %s70 = sphi 0, %s72
      %s73 = sphi 0, %s70
      %s74 = sphi 0, %s73
      %s90 = sphi 0, %s74
      %s96 = sphi 0, %s98
      %s99 = sphi 0, %s96
      %s100 = sphi 0, %s99
      %s116 = sphi 0, %s100
      %s124 = sphi 0, %s126
      %s127 = sphi 0, %s124
      %s128 = sphi 0, %s127
      %s144 = sphi 0, %s128
    $region4: #{tpu_custom_call.1} parent=1 // loop_header_branch
      %21 = sbr.rel (%p19) target = $region8
    $region5: #{tpu_custom_call.1} parent=1 // loop_body
      %s23 = ssub.s32 %s18, 1
      %s24 = ssub.s32 %s18, 2
      %s31 = sadd.s32 1, %s26
      %p32 = scmp.ge.s32.totalorder %s31, 1
      %s33 = scalar_select %p32, 0, %s31
      %s34 = sadd.s32 1, %s25
      %s35 = scalar_select %p32, %s34, %s25
      %p36 = scmp.ge.s32.totalorder %s35, 2
      %s37 = scalar_select %p36, 0, %s35
      %s38 = ssub.s32 %s25, %s37
      %s39 = ssub.s32 %s26, %s33
      %s40 = sor.u32 %s38, %s39
      %p41 = scmp.eq.s32.totalorder %s40, 0
      %s43 = sadd.s32 %s42, 1
      %s44 = scalar_select %p41, %s42, %s43
      %p47 = pneg %p41
      %p48 = scmp.eq.s32.totalorder %s18, 1
      %p49 = por %p47, %p48
      %p50 = scmp.ne.s32.totalorder %s42, %s45
      %p51 = scmp.eq.s32.totalorder %s18, 0
      %p52 = por %p50, %p51
      %p53 = scmp.ne.s32.totalorder %s42, %s45
      %p54 = scmp.eq.s32.totalorder %s23, 1
      %p55 = por %p53, %p54
      %p56 = scmp.ne.s32.totalorder %s45, %s46
      %p57 = scmp.eq.s32.totalorder %s23, 0
      %p58 = por %p56, %p57
      %p59 = scmp.ne.s32.totalorder %s45, %s46
      %p60 = scmp.eq.s32.totalorder %s24, 1
      %p61 = por %p59, %p60
      %p63 = scmp.ne.s32.totalorder %s46, %s62
      %p64 = scmp.eq.s32.totalorder %s24, 0
      %p65 = por %p63, %p64
      %s66 = ssub.s32 %s25, %s37
      %s67 = ssub.s32 %s26, %s33
      %s68 = sor.u32 %s66, %s67
      %p69 = scmp.eq.s32.totalorder %s68, 0
      %s71 = sadd.s32 %s70, 1
      %s72 = scalar_select %p69, %s70, %s71
      %p75 = pneg %p69
      %p76 = scmp.eq.s32.totalorder %s18, 1
      %p77 = por %p75, %p76
      %p78 = scmp.ne.s32.totalorder %s70, %s73
      %p79 = scmp.eq.s32.totalorder %s18, 0
      %p80 = por %p78, %p79
      %p81 = scmp.ne.s32.totalorder %s70, %s73
      %p82 = scmp.eq.s32.totalorder %s23, 1
      %p83 = por %p81, %p82
      %p84 = scmp.ne.s32.totalorder %s73, %s74
      %p85 = scmp.eq.s32.totalorder %s23, 0
      %p86 = por %p84, %p85
      %p87 = scmp.ne.s32.totalorder %s73, %s74
      %p88 = scmp.eq.s32.totalorder %s24, 1
      %p89 = por %p87, %p88
      %p91 = scmp.ne.s32.totalorder %s74, %s90
      %p92 = scmp.eq.s32.totalorder %s24, 0
      %p93 = por %p91, %p92
      %s94 = ssub.s32 %s25, %s37
      %p95 = scmp.eq.s32.totalorder %s94, 0
      %s97 = sadd.s32 %s96, 1
      %s98 = scalar_select %p95, %s96, %s97
      %p101 = pneg %p95
      %p102 = scmp.eq.s32.totalorder %s18, 1
      %p103 = por %p101, %p102
      %p104 = scmp.ne.s32.totalorder %s96, %s99
      %p105 = scmp.eq.s32.totalorder %s18, 0
      %p106 = por %p104, %p105
      %p107 = scmp.ne.s32.totalorder %s96, %s99
      %p108 = scmp.eq.s32.totalorder %s23, 1
      %p109 = por %p107, %p108
      %p110 = scmp.ne.s32.totalorder %s99, %s100
      %p111 = scmp.eq.s32.totalorder %s23, 0
      %p112 = por %p110, %p111
      %p113 = scmp.ne.s32.totalorder %s99, %s100
      %p114 = scmp.eq.s32.totalorder %s24, 1
      %p115 = por %p113, %p114
      %p117 = scmp.ne.s32.totalorder %s100, %s116
      %p118 = scmp.eq.s32.totalorder %s24, 0
      %p119 = por %p117, %p118
      %s120 = sadd.s32 %s25, %s26
      %s121 = sadd.s32 %s37, %s33
      %s122 = ssub.s32 %s120, %s121
      %p123 = scmp.eq.s32.totalorder %s122, 0
      %s125 = sadd.s32 %s124, 1
      %s126 = scalar_select %p123, %s124, %s125
      %p129 = pneg %p123
      %p130 = scmp.eq.s32.totalorder %s18, 1
      %p131 = por %p129, %p130
      %p132 = scmp.ne.s32.totalorder %s124, %s127
      %p133 = scmp.eq.s32.totalorder %s18, 0
      %p134 = por %p132, %p133
      %p135 = scmp.ne.s32.totalorder %s124, %s127
      %p136 = scmp.eq.s32.totalorder %s23, 1
      %p137 = por %p135, %p136
      %p138 = scmp.ne.s32.totalorder %s127, %s128
      %p139 = scmp.eq.s32.totalorder %s23, 0
      %p140 = por %p138, %p139
      %p141 = scmp.ne.s32.totalorder %s127, %s128
      %p142 = scmp.eq.s32.totalorder %s24, 1
      %p143 = por %p141, %p142
      %p145 = scmp.ne.s32.totalorder %s128, %s144
      %p146 = scmp.eq.s32.totalorder %s24, 0
      %p147 = por %p145, %p146
      %p148 = scmp.le.s32.totalorder 1, %s18
      %p149 = scmp.lt.s32.totalorder %s18, 3
      %p150 = pnand %p148, %p149
      %p151 = pneg %p150
      // Predicated region
      $region9: #{tpu_custom_call.1} parent=5 // pred_check
        _
      $region10: #{tpu_custom_call.1} parent=5 // pred_check_branch
        %153 = sbr.rel (%p150) target = $region12
      $region11: #{tpu_custom_call.1} parent=5 // pred_region
        %s154 = ssub.s32 %s18, 1
      $region12: #{tpu_custom_call.1} parent=5 // pred_fallthru
        _
      %p155 = scmp.lt.s32.totalorder %s18, 2
      // Predicated region
      $region13: #{tpu_custom_call.1} parent=5 // pred_check
        %p156 = pneg %p155
      $region14: #{tpu_custom_call.1} parent=5 // pred_check_branch
        %158 = sbr.rel (%p156) target = $region16
      $region15: #{tpu_custom_call.1} parent=5 // pred_region
        // Predicated region
        $region17: #{tpu_custom_call.1} parent=15 // pred_check
          %p159 = pneg %p52
        $region18: #{tpu_custom_call.1} parent=15 // pred_check_branch
          %161 = sbr.rel (%p159) target = $region20
        $region19: #{tpu_custom_call.1} parent=15 // pred_region
          %s162 = sand.u32 %s42, 1
          %s163 = scalar_lea.sflag [#allocation3], %s162
          %s164 = sand.u32 %s42, 1
          %s165 = smul.addr %s164, 8
          %s166 = scalar_lea.vmem [#allocation2], %s165
          %s168 = ssub.s32 128, 128
          %169 = vsyncadd %s163, %s168
          %s170 = sadd.s32 %s26, %s25
          %s171 = smul.addr %s170, 128
          %s172 = scalar_lea.hbm %s0, %s171
          %s174 = sshll.u32 %s166, 4
          %s175 = int_to_ptr.vmem [resolvable:$true] %s174
          %177 = dma.hbm_to_vmem [thread:$0]  %s172, 128, %s175, %s163
        $region20: #{tpu_custom_call.1} parent=15 // pred_fallthru
          _
        // Predicated region
        $region21: #{tpu_custom_call.1} parent=15 // pred_check
          %p178 = pneg %p80
        $region22: #{tpu_custom_call.1} parent=15 // pred_check_branch
          %180 = sbr.rel (%p178) target = $region24
        $region23: #{tpu_custom_call.1} parent=15 // pred_region
          %s181 = sand.u32 %s70, 1
          %s182 = scalar_lea.sflag [#allocation6], %s181
          %s183 = sand.u32 %s70, 1
          %s184 = smul.addr %s183, 8
          %s185 = scalar_lea.vmem [#allocation5], %s184
          %s187 = ssub.s32 128, 128
          %188 = vsyncadd %s182, %s187
          %s189 = sadd.s32 %s26, %s25
          %s190 = smul.addr %s189, 128
          %s191 = scalar_lea.hbm %s1, %s190
          %s193 = sshll.u32 %s185, 4
          %s194 = int_to_ptr.vmem [resolvable:$true] %s193
          %196 = dma.hbm_to_vmem [thread:$0]  %s191, 128, %s194, %s182
        $region24: #{tpu_custom_call.1} parent=15 // pred_fallthru
          _
        // Predicated region
        $region25: #{tpu_custom_call.1} parent=15 // pred_check
          %p197 = pneg %p106
        $region26: #{tpu_custom_call.1} parent=15 // pred_check_branch
          %199 = sbr.rel (%p197) target = $region28
        $region27: #{tpu_custom_call.1} parent=15 // pred_region
          %p200 = scmp.lt.s32.totalorder %s25, 1
          %s201 = scalar_select %p200, %s25, 1
          %s202 = scalar_lea.vmem %s2, %s201
        $region28: #{tpu_custom_call.1} parent=15 // pred_fallthru
          _
      $region16: #{tpu_custom_call.1} parent=5 // pred_fallthru
        _
      %p203 = scmp.le.s32.totalorder 1, %s18
      %p204 = scmp.lt.s32.totalorder %s18, 3
      %p205 = pnand %p203, %p204
      %p206 = pneg %p205
      // Predicated region
      $region29: #{tpu_custom_call.1} parent=5 // pred_check
        _
      $region30: #{tpu_custom_call.1} parent=5 // pred_check_branch
        %208 = sbr.rel (%p205) target = $region32
      $region31: #{tpu_custom_call.1} parent=5 // pred_region
        %s209 = ssub.s32 %s18, 1
        %s210 = sand.u32 %s45, 1
        %s211 = scalar_lea.sflag [#allocation3], %s210
        %s212 = sand.u32 %s45, 1
        %s213 = smul.addr %s212, 8
        %s214 = scalar_lea.vmem [#allocation2], %s213
        // Predicated region
        $region33: #{tpu_custom_call.1} parent=31 // pred_check
          %p215 = pneg %p58
        $region34: #{tpu_custom_call.1} parent=31 // pred_check_branch
          %217 = sbr.rel (%p215) target = $region36
        $region35: #{tpu_custom_call.1} parent=31 // pred_region
          %218 = dma.done %s211, 128
        $region36: #{tpu_custom_call.1} parent=31 // pred_fallthru
          _
        %s219 = sand.u32 %s73, 1
        %s220 = scalar_lea.sflag [#allocation6], %s219
        %s221 = sand.u32 %s73, 1
        %s222 = smul.addr %s221, 8
        %s223 = scalar_lea.vmem [#allocation5], %s222
        // Predicated region
        $region37: #{tpu_custom_call.1} parent=31 // pred_check
          %p224 = pneg %p86
        $region38: #{tpu_custom_call.1} parent=31 // pred_check_branch
          %226 = sbr.rel (%p224) target = $region40
        $region39: #{tpu_custom_call.1} parent=31 // pred_region
          %227 = dma.done %s220, 128
        $region40: #{tpu_custom_call.1} parent=31 // pred_fallthru
          _
        %s228 = sand.u32 %s45, 1
        %s229 = scalar_lea.sflag [#allocation3], %s228
        %s230 = sand.u32 %s45, 1
        %s231 = smul.addr %s230, 8
        %s232 = scalar_lea.vmem [#allocation2], %s231
        %p233 = pneg %p58
        %p234 = pneg %p55
        %s235 = sand.u32 %s73, 1
        %s236 = scalar_lea.sflag [#allocation6], %s235
        %s237 = sand.u32 %s73, 1
        %s238 = smul.addr %s237, 8
        %s239 = scalar_lea.vmem [#allocation5], %s238
        %p240 = pneg %p86
        %p241 = pneg %p83
        %p242 = scmp.lt.s32.totalorder %s27, 1
        %s243 = scalar_select %p242, %s27, 1
        %s244 = scalar_lea.vmem %s2, %s243
        %p245 = pneg %p112
        %p246 = pneg %p109
        %p247 = pneg %p140
        %p248 = pneg %p137
        %s249 = sand.u32 %s127, 1
        %s250 = scalar_lea.sflag [#allocation4], %s249
        %s251 = sand.u32 %s127, 1
        %s252 = scalar_lea.vmem [#allocation7], %s251
        %p253 = scmp.lt.s32.totalorder %s27, 1
        %s254 = scalar_select %p253, %s27, 1
        %s255 = scalar_lea.vmem %s2, %s254
        %s256 = sadd.s32 %s27, %s28
        %v257 = vld [vmem:[%s214] sm:$0xff]
        %v258 = vld [vmem:[%s223] sm:$0xff]
        %v259 = vsub.f32 %v257, %v258
        %v260 = vand.u32 2147483647, %v259
        %v261 = vld [vmem:[%s255] sm:$0x1]
        %v262 = vlaneseq
        %v263 = vshrl.u32 %v262, 7
        %s264 = smul.u32 %s28, 8
        %v265 = vstv %s264
        %v266 = vadd.s32 %v263, %v265
        %v267 = vlaneseq
        %v268 = vshrl.u32 %v267, 7
        %v269 = vsub.s32 0, %v268
        %v270 = vrot.slane %v261, %v269
        %vm271 = vcmp.lt.s32.totalorder %v266, %v270
        %v272 = vsel %vm271, 1, 0
        %273 = vset.pattern.permute.xlu0 0
        %274 = vperm.xlu0 %273, %v272
        %v275 = vpop.permute.xlu0 %274
        %vm276 = vcmp.eq.s32.totalorder %v275, 1
        %v277 = vsel %vm276, %v260, 0.0
        %vm278 = vcmask 64512
        %v279 = vsel %vm278, %v277, 0.0
        %v280 = vrot.slane %v279, 4
        %v281 = vadd.f32 %v279, %v280
        %v282 = vrot.slane %v281, 2
        %v283 = vadd.f32 %v281, %v282
        %v284 = vrot.slane %v283, 1
        %v285 = vadd.f32 %v283, %v284
        %v286 = vlaneseq
        %v287 = vand.u32 %v286, 127
        %v288 = vcvt.s32.f32 %v261
        %v289 = vmul.f32 %v288, %v288
        %v290 = vmax.f32 %v289, 1.0
        %v291 = vrcp.pop %v290
        %v292 = vmul.f32 1.0, %v291
        %293 = vset.pattern.permute.xlu0 0
        %294 = vperm.xlu0 %293, %v261
        %v295 = vpop.permute.xlu0 %294
        %v296 = vlaneseq
        %v297 = vshrl.u32 %v296, 7
        %v298 = vsub.s32 0, %v297
        %v299 = vrot.slane %v295, %v298
        %vm300 = vcmp.lt.s32.totalorder %v287, %v299
        %302 = vset.pattern.permute.xlu0 0
        %303 = vperm.xlu0 %302, %v292
        %v304 = vpop.permute.xlu0 %303
        %v306 = vlaneseq
        %v307 = vshrl.u32 %v306, 7
        %v308 = vsub.s32 0, %v307
        %v309 = vrot.slane %v304, %v308
        %v310 = vsel %vm300, %v309, 0.0
        %v311 = vmul.f32 %v285, %v310
        %v312 = vadd.f32 %v311, 0.0
        %vm313 = vcmask 57344
        %314 = vst.msk [vmem:[%s252] sm:$0x1] %vm313, %v312
        %s315 = sand.u32 %s127, 1
        %s316 = scalar_lea.sflag [#allocation4], %s315
        %s317 = sand.u32 %s127, 1
        %s318 = scalar_lea.vmem [#allocation7], %s317
        // Predicated region
        $region41: #{tpu_custom_call.1} parent=31 // pred_check
          %p319 = pneg %p137
        $region42: #{tpu_custom_call.1} parent=31 // pred_check_branch
          %321 = sbr.rel (%p319) target = $region44
        $region43: #{tpu_custom_call.1} parent=31 // pred_region
          %s322 = sadd.s32 %s27, %s28
          %s324 = ssub.s32 16, 16
          %325 = vsyncadd %s316, %s324
          %s326 = smul.addr %s322, 16
          %s327 = scalar_lea.hbm %s3, %s326
          %s329 = sshll.u32 %s318, 4
          %s330 = int_to_ptr.vmem [resolvable:$true] %s329
          %332 = dma.vmem_to_hbm [thread:$0]  %s330, 16, %s327, %s316
        $region44: #{tpu_custom_call.1} parent=31 // pred_fallthru
          _
      $region32: #{tpu_custom_call.1} parent=5 // pred_fallthru
        _
      %p333 = scmp.le.s32.totalorder 2, %s18
      // Predicated region
      $region45: #{tpu_custom_call.1} parent=5 // pred_check
        %p334 = pneg %p333
      $region46: #{tpu_custom_call.1} parent=5 // pred_check_branch
        %336 = sbr.rel (%p334) target = $region48
      $region47: #{tpu_custom_call.1} parent=5 // pred_region
        %s337 = ssub.s32 %s18, 2
        // Predicated region
        $region49: #{tpu_custom_call.1} parent=47 // pred_check
          %p338 = pneg %p143
        $region50: #{tpu_custom_call.1} parent=47 // pred_check_branch
          %340 = sbr.rel (%p338) target = $region52
        $region51: #{tpu_custom_call.1} parent=47 // pred_region
          %s341 = sand.u32 %s128, 1
          %s342 = scalar_lea.sflag [#allocation4], %s341
          %s343 = sand.u32 %s128, 1
          %s344 = scalar_lea.vmem [#allocation7], %s343
          %345 = dma.done %s342, 16
        $region52: #{tpu_custom_call.1} parent=47 // pred_fallthru
          _
      $region48: #{tpu_custom_call.1} parent=5 // pred_fallthru
        _
    $region6: #{tpu_custom_call.1} parent=1 // loop_footer
      %s22 = sadd.s32 1, %s18
    $region7: #{tpu_custom_call.1} parent=1 // loop_footer_branch
      %17 = sbr.rel target = $region3
    $region8: #{tpu_custom_call.1} parent=1 // loop_exit
      _
    %346 = vsyncpa [#allocation3], 1
    %s347 = scalar_lea.sflag [#allocation3], 1
    %348 = vsyncpa %s347, 1
    %349 = vsyncpa [#allocation6], 1
    %s350 = scalar_lea.sflag [#allocation6], 1
    %351 = vsyncpa %s350, 1
    %352 = vsyncpa [#allocation4], 1
    %s353 = scalar_lea.sflag [#allocation4], 1
    %354 = vsyncpa %s353, 1

</llo_original>
